<compile_context>
chip_gen: v6e
topology: v6e:2x2x1
jax: 0.10.0
libtpu: 0.0.40
codegen_flags: <defaults>
</compile_context>

<pallas_src>
import jax
import jax.numpy as jnp
from jax.experimental import pallas as pl
from jax.experimental.pallas import tpu as pltpu


_LANE = 128
_MAX_TILE = 16384                      # absolute lane-tile cap
_MAX_NB = 8                            # max batch elements folded into one block
_TARGET_BLOCK_BYTES = 2 * 1024 * 1024  # ~2 MiB blocks -> >=85% of HBM roofline
_MIN_MXU_C = 8                         # below this the MXU mat-vec is degenerate


def _round_up(x, m):
    return ((x + m - 1) // m) * m


def _divisors_desc(n):
    return [d for d in range(n, 0, -1) if n % d == 0]


def _vmem_budget():
    """(tile_budget_bytes, vmem_limit_bytes) tuned per TPU generation."""
    cap = None
    try:
        cap = getattr(pltpu.get_tpu_info(), "vmem_capacity_bytes", None)
    except Exception:
        cap = None
    if cap is not None and cap >= 100 * 1024 * 1024:   # v5e / v6e: 128 MiB VMEM
        return 56 * 1024 * 1024, 96 * 1024 * 1024
    return 32 * 1024 * 1024, 48 * 1024 * 1024          # v7x: 64 MiB VMEM


def _pick_tiling(N, C, HW, dtype_bytes, tile_budget):
    """Choose (nb, tile): batch elements per block and lane tile (x128)."""
    row_bytes = max(1, C * dtype_bytes)
    # Largest lane tile (multiple of 128) hitting the ~2 MiB block target while
    # double-buffered in+out blocks stay inside the VMEM budget.
    budget_lanes = tile_budget // (4 * row_bytes)
    target_lanes = _TARGET_BLOCK_BYTES // row_bytes
    tile = min(_MAX_TILE,
               max(_LANE, budget_lanes),
               max(_LANE, target_lanes),
               _round_up(HW, _LANE))
    tile = max(_LANE, (tile // _LANE) * _LANE)

    # Tiny spatial extents: fold several batch elements into one block so each
    # DMA stays large.  nb is a divisor of N (no partial batch blocks) and the
    # grid keeps >= 2 steps so both v7x TensorCores get work.
    nb = 1
    if HW <= tile and N > 1:
        blk = C * tile * dtype_bytes
        cap = min(N, _MAX_NB,
                  max(1, _TARGET_BLOCK_BYTES // max(1, blk)),
                  max(1, tile_budget // max(1, 4 * blk)))
        for d in _divisors_desc(N):
            if d <= cap and (N // d) * pl.cdiv(HW, tile) >= 2:
                nb = d
                break

    # If the grid collapsed to a single step (e.g. N == 1, HW <= tile), shrink
    # the lane tile to recover some pipelining / megacore parallelism.
    while tile > _LANE and pl.cdiv(N, nb) * pl.cdiv(HW, tile) < 2:
        tile = max(_LANE, _round_up(tile // 2, _LANE))
    return nb, tile


def _make_sse_kernel(use_mxu):
    def kernel(x_ref, w_ref, o_ref):
        # x_ref / o_ref: (nb, C, T); w_ref: (1, C) [MXU path] or (C, 1) [VPU path]
        w = w_ref[...]
        for n in range(x_ref.shape[0]):           # static unroll, nb <= _MAX_NB
            x = x_ref[n]                          # (C, T)
            if use_mxu:
                # 1x1 conv == (1, C) @ (C, T) mat-vec on the MXU, f32 accumulate.
                z = jnp.dot(w, x, preferred_element_type=jnp.float32)       # (1, T)
            else:
                # Tiny C: VPU weighted channel sum (f32 temp is only C*T*4 B).
                z = jnp.sum(x.astype(jnp.float32) * w, axis=0, keepdims=True)
            # Gate applied in the input dtype (avoids a (C, T) f32 temporary);
            # exact for f32 inputs, bf16-quantized gate for bf16 inputs.
            a = jax.nn.sigmoid(z).astype(x.dtype)                           # (1, T)
            o_ref[n] = (x * a).astype(o_ref.dtype)                          # (C, T)
    return kernel


def spatial_attention2d(x, weight):
    """sSE block: out = x * sigmoid(conv1x1(x)).

    x: (N, C, H, W) NCHW.  weight: squeeze conv weight, any shape with C
    elements (e.g. (C,) or PyTorch's (1, C, 1, 1)).
    """
    N, C, H, W = x.shape
    HW = H * W
    dtype_bytes = jnp.dtype(x.dtype).itemsize
    tile_budget, vmem_limit = _vmem_budget()
    nb, tile = _pick_tiling(N, C, HW, dtype_bytes, tile_budget)

    xf = x.reshape(N, C, HW)                      # free view, no extra HBM traffic
    w_flat = weight.reshape(-1)
    assert w_flat.shape[0] == C, "weight must have C elements"

    use_mxu = C >= _MIN_MXU_C
    if use_mxu:
        # Lane-major (1, C): natural MXU LHS, no (C,1)->(8,128) tile padding waste.
        w_block = w_flat.reshape(1, C).astype(x.dtype)
        w_spec = pl.BlockSpec((1, C), lambda b, t: (0, 0))
    else:
        # Sublane-major (C, 1) broadcasts directly against the (C, T) block.
        w_block = w_flat.reshape(C, 1).astype(jnp.float32)
        w_spec = pl.BlockSpec((C, 1), lambda b, t: (0, 0))

    grid = (pl.cdiv(N, nb), pl.cdiv(HW, tile))    # no HBM pad / output slice

    out = pl.pallas_call(
        _make_sse_kernel(use_mxu),
        out_shape=jax.ShapeDtypeStruct((N, C, HW), x.dtype),
        grid_spec=pltpu.PrefetchScalarGridSpec(
            num_scalar_prefetch=0,
            grid=grid,
            in_specs=[
                pl.BlockSpec((nb, C, tile), lambda b, t: (b, 0, t)),
                w_spec,
            ],
            out_specs=pl.BlockSpec((nb, C, tile), lambda b, t: (b, 0, t)),
        ),
        compiler_params=pltpu.CompilerParams(
            dimension_semantics=("parallel", "parallel"),
            vmem_limit_bytes=vmem_limit,
        ),
    )(xf, w_block)

    return out.reshape(N, C, H, W)


def _reference(x, weight):
    # Pure-JAX reference of the PyTorch forward (f32 squeeze + sigmoid).
    z = jnp.einsum("nchw,c->nhw", x.astype(jnp.float32), weight.astype(jnp.float32))
    a = jax.nn.sigmoid(z)[:, None, :, :]
    return (x * a.astype(x.dtype)).astype(x.dtype)


if __name__ == "__main__":
    key = jax.random.PRNGKey(0)

    def run_case(case_key, N, C, H, W):
        kx, kw = jax.random.split(case_key)
        x = jax.random.normal(kx, (N, C, H, W), dtype=jnp.float32)
        # Conv2d(C, 1, 1, bias=False): deterministic kaiming-uniform-like init.
        bound = 1.0 / float(C) ** 0.5
        weight = jax.random.uniform(kw, (C,), dtype=jnp.float32,
                                    minval=-bound, maxval=bound)
        out = jax.block_until_ready(spatial_attention2d(x, weight))
        ref = _reference(x, weight)
        assert out.shape == (N, C, H, W)
        assert jnp.allclose(out, ref, atol=1e-5, rtol=1e-5), \
            f"mismatch vs reference at N={N} C={C} H={H} W={W}"

    k1, k2 = jax.random.split(key)
    # Spec shape: exact lane tile, VPU squeeze path (C < 8), nb = 1.
    run_case(k1, 2, 4, 16, 16)
    # HW=49 (not a multiple of 128): exercises partial-block masking without
    # any HBM pad/slice, MXU mat-vec path (C >= 8), and batch folding nb = 2.
    run_case(k2, 4, 8, 7, 7)

    print("KERNEL_OK")
</pallas_src>

<mosaic_0001>
module attributes {stable_mosaic.version = 11 : i64} {
  func.func @kernel(%arg0: i32, %arg1: i32, %arg2: memref<1x4x256xf32, #tpu.memory_space<vmem>>, %arg3: memref<4x1xf32, #tpu.memory_space<vmem>>, %arg4: memref<1x4x256xf32, #tpu.memory_space<vmem>>) attributes {dimension_semantics = [#tpu.dimension_semantics<parallel>, #tpu.dimension_semantics<parallel>], iteration_bounds = array<i64: 2, 1>, scalar_prefetch = 0 : i64, scratch_operands = 0 : i64, tpu.core_type = #tpu.core_type<tc>, window_params = [{transform_indices = @transform_0, window_bounds = array<i64: 1, 4, 256>}, {pipeline_mode = #tpu.pipeline_mode<synchronous>, transform_indices = @transform_1, window_bounds = array<i64: 4, 1>}, {transform_indices = @transform_2, window_bounds = array<i64: 1, 4, 256>}]} {
    %c0 = arith.constant 0 : index
    %c0_0 = arith.constant 0 : index
    %0 = vector.load %arg3[%c0, %c0_0] : memref<4x1xf32, #tpu.memory_space<vmem>>, vector<4x1xf32>
    %c0_1 = arith.constant 0 : index
    %c0_2 = arith.constant 0 : index
    %c0_3 = arith.constant 0 : index
    %1 = vector.load %arg2[%c0_1, %c0_2, %c0_3] : memref<1x4x256xf32, #tpu.memory_space<vmem>>, vector<1x4x256xf32>
    %2 = vector.shape_cast %1 : vector<1x4x256xf32> to vector<4x256xf32>
    %3 = vector.broadcast %0 : vector<4x1xf32> to vector<4x256xf32>
    %4 = arith.mulf %2, %3 : vector<4x256xf32>
    %cst = arith.constant dense<0.000000e+00> : vector<256xf32>
    %5 = vector.multi_reduction <add>, %4, %cst [0] : vector<4x256xf32> to vector<256xf32>
    %6 = vector.shape_cast %5 : vector<256xf32> to vector<1x256xf32>
    %7 = arith.negf %6 : vector<1x256xf32>
    %8 = math.exp %7 : vector<1x256xf32>
    %cst_4 = arith.constant 1.000000e+00 : f32
    %9 = vector.broadcast %cst_4 : f32 to vector<1x256xf32>
    %10 = arith.addf %9, %8 : vector<1x256xf32>
    %11 = arith.divf %9, %10 : vector<1x256xf32>
    %12 = vector.broadcast %11 : vector<1x256xf32> to vector<4x256xf32>
    %13 = arith.mulf %2, %12 : vector<4x256xf32>
    %c0_5 = arith.constant 0 : index
    %c0_6 = arith.constant 0 : index
    %c0_7 = arith.constant 0 : index
    %14 = vector.load %arg4[%c0_5, %c0_6, %c0_7] : memref<1x4x256xf32, #tpu.memory_space<vmem>>, vector<1x4x256xf32>
    %15 = vector.shape_cast %14 : vector<1x4x256xf32> to vector<4x256xf32>
    %16 = vector.shape_cast %13 : vector<4x256xf32> to vector<1x4x256xf32>
    tpu.vector_store %arg4[%c0_5, %c0_6, %c0_7], %16 {strides = array<i32>} : memref<1x4x256xf32, #tpu.memory_space<vmem>>, vector<1x4x256xf32>,
    return
  }
  func.func @transform_0(%arg0: i32, %arg1: i32) -> (i32, i32, i32) {
    %c0_i32 = arith.constant 0 : i32
    %c0_i32_0 = arith.constant 0 : i32
    return %arg0, %c0_i32, %arg1 : i32, i32, i32
  }
  func.func @transform_1(%arg0: i32, %arg1: i32) -> (i32, i32) {
    %c0_i32 = arith.constant 0 : i32
    %c0_i32_0 = arith.constant 0 : i32
    %c0_i32_1 = arith.constant 0 : i32
    return %c0_i32, %c0_i32_0 : i32, i32
  }
  func.func @transform_2(%arg0: i32, %arg1: i32) -> (i32, i32, i32) {
    %c0_i32 = arith.constant 0 : i32
    %c0_i32_0 = arith.constant 0 : i32
    return %arg0, %c0_i32, %arg1 : i32, i32, i32
  }
}

</mosaic_0001>

<llo_original>
// kernel: tpu_custom_call.1
$region0: #{tpu_custom_call.1}
  #allocation0 [shape = 'u32[]', space=smem, size = 0x4, offset = 0x4, fixed_abs, tag = 'smem constant byte address 0x4 - core index']
  #allocation1 [shape = 'u32[144,128]{1,0:T(1,128)}', space=vmem, size = 0x12000, scoped, tag = 'internal scratch']
  %s0 = inlined_call_operand.hbm [shape: f32[2,4,256], index: 0, kind: input, shape index: {}]
  %s1 = inlined_call_operand.vmem [shape: f32[4,1], index: 1, kind: input, shape index: {}]
  %s2 = inlined_call_operand.hbm [shape: f32[2,4,256], index: 2, kind: output, shape index: {}]
  %s3 = sld [smem:[#allocation0]]
  $region45: #{tpu_custom_call.1} parent=0
    _
  %s5 = ssub.s32 1, %s3
  %s6 = scalar_select 0, %s5, %s3
  $region1: #{tpu_custom_call.1} parent=0
    #allocation2 [shape = 'u8[8192]{0}', space=vmem, size = 0x2000, scoped, tag = 'input window, operand 0']
    #allocation3 [shape = 's32[2]{0}', space=sflag, size = 0x8, scoped, tag = 'scoped memory for tpu_custom_call.1']
    #allocation4 [shape = 's32[2]{0}', space=sflag, size = 0x8, scoped, tag = 'scoped memory for tpu_custom_call.1']
    #allocation5 [shape = 'u8[8192]{0}', space=vmem, size = 0x2000, scoped, tag = 'output window, operand 0']
    %7 = vsyncpa [#allocation3], 0
    %s8 = scalar_lea.sflag [#allocation3], 1
    %9 = vsyncpa %s8, 0
    %10 = vsyncpa [#allocation4], 0
    %s11 = scalar_lea.sflag [#allocation4], 1
    %12 = vsyncpa %s11, 0
    loop: start=0, step=1, limit=4
    $region2: #{tpu_custom_call.1} parent=1 // loop_pre_header
      _
    $region3: #{tpu_custom_call.1} parent=1 // loop_header
      %s14 = sphi 0, %s18
      %p15 = scmp.ge.s32.totalorder %s14, 4
      %s21 = sphi 0, %s33
      %s22 = sphi 0, %s29
      %s23 = sphi 0, %s21
      %s24 = sphi 0, %s22
      %s25 = sphi 0, %s23
      %s26 = sphi 0, %s24
      %s38 = sphi 0, %s40
      %s41 = sphi 0, %s38
      %s42 = sphi 0, %s41
      %s58 = sphi 0, %s42
      %s62 = sphi 0, %s62
      %s64 = sphi 0, %s62
      %s65 = sphi 0, %s64
      %s79 = sphi 0, %s65
      %s87 = sphi 0, %s89
      %s90 = sphi 0, %s87
      %s91 = sphi 0, %s90
      %s107 = sphi 0, %s91
    $region4: #{tpu_custom_call.1} parent=1 // loop_header_branch
      %17 = sbr.rel (%p15) target = $region8
    $region5: #{tpu_custom_call.1} parent=1 // loop_body
      %s19 = ssub.s32 %s14, 1
      %s20 = ssub.s32 %s14, 2
      %s27 = sadd.s32 1, %s22
      %p28 = scmp.ge.s32.totalorder %s27, 1
      %s29 = scalar_select %p28, 0, %s27
      %s30 = sadd.s32 1, %s21
      %s31 = scalar_select %p28, %s30, %s21
      %p32 = scmp.ge.s32.totalorder %s31, 2
      %s33 = scalar_select %p32, 0, %s31
      %s34 = ssub.s32 %s21, %s33
      %s35 = ssub.s32 %s22, %s29
      %s36 = sor.u32 %s34, %s35
      %p37 = scmp.eq.s32.totalorder %s36, 0
      %s39 = sadd.s32 %s38, 1
      %s40 = scalar_select %p37, %s38, %s39
      %p43 = pneg %p37
      %p44 = scmp.eq.s32.totalorder %s14, 1
      %p45 = por %p43, %p44
      %p46 = scmp.ne.s32.totalorder %s38, %s41
      %p47 = scmp.eq.s32.totalorder %s14, 0
      %p48 = por %p46, %p47
      %p49 = scmp.ne.s32.totalorder %s38, %s41
      %p50 = scmp.eq.s32.totalorder %s19, 1
      %p51 = por %p49, %p50
      %p52 = scmp.ne.s32.totalorder %s41, %s42
      %p53 = scmp.eq.s32.totalorder %s19, 0
      %p54 = por %p52, %p53
      %p55 = scmp.ne.s32.totalorder %s41, %s42
      %p56 = scmp.eq.s32.totalorder %s20, 1
      %p57 = por %p55, %p56
      %p59 = scmp.ne.s32.totalorder %s42, %s58
      %p60 = scmp.eq.s32.totalorder %s20, 0
      %p61 = por %p59, %p60
      %s63 = sadd.s32 %s62, 1
      %p66 = scmp.eq.s32.totalorder %s14, 1
      %p67 = scmp.ne.s32.totalorder %s62, %s64
      %p68 = scmp.eq.s32.totalorder %s14, 0
      %p69 = por %p67, %p68
      %p70 = scmp.ne.s32.totalorder %s62, %s64
      %p71 = scmp.eq.s32.totalorder %s19, 1
      %p72 = por %p70, %p71
      %p73 = scmp.ne.s32.totalorder %s64, %s65
      %p74 = scmp.eq.s32.totalorder %s19, 0
      %p75 = por %p73, %p74
      %p76 = scmp.ne.s32.totalorder %s64, %s65
      %p77 = scmp.eq.s32.totalorder %s20, 1
      %p78 = por %p76, %p77
      %p80 = scmp.ne.s32.totalorder %s65, %s79
      %p81 = scmp.eq.s32.totalorder %s20, 0
      %p82 = por %p80, %p81
      %s83 = ssub.s32 %s21, %s33
      %s84 = ssub.s32 %s22, %s29
      %s85 = sor.u32 %s83, %s84
      %p86 = scmp.eq.s32.totalorder %s85, 0
      %s88 = sadd.s32 %s87, 1
      %s89 = scalar_select %p86, %s87, %s88
      %p92 = pneg %p86
      %p93 = scmp.eq.s32.totalorder %s14, 1
      %p94 = por %p92, %p93
      %p95 = scmp.ne.s32.totalorder %s87, %s90
      %p96 = scmp.eq.s32.totalorder %s14, 0
      %p97 = por %p95, %p96
      %p98 = scmp.ne.s32.totalorder %s87, %s90
      %p99 = scmp.eq.s32.totalorder %s19, 1
      %p100 = por %p98, %p99
      %p101 = scmp.ne.s32.totalorder %s90, %s91
      %p102 = scmp.eq.s32.totalorder %s19, 0
      %p103 = por %p101, %p102
      %p104 = scmp.ne.s32.totalorder %s90, %s91
      %p105 = scmp.eq.s32.totalorder %s20, 1
      %p106 = por %p104, %p105
      %p108 = scmp.ne.s32.totalorder %s91, %s107
      %p109 = scmp.eq.s32.totalorder %s20, 0
      %p110 = por %p108, %p109
      %p111 = scmp.le.s32.totalorder 1, %s14
      %p112 = scmp.lt.s32.totalorder %s14, 3
      %p113 = pnand %p111, %p112
      %p114 = pneg %p113
      // Predicated region
      $region9: #{tpu_custom_call.1} parent=5 // pred_check
        _
      $region10: #{tpu_custom_call.1} parent=5 // pred_check_branch
        %116 = sbr.rel (%p113) target = $region12
      $region11: #{tpu_custom_call.1} parent=5 // pred_region
        %s117 = ssub.s32 %s14, 1
        // Predicated region
        $region13: #{tpu_custom_call.1} parent=11 // pred_check
          %p118 = pneg %p75
        $region14: #{tpu_custom_call.1} parent=11 // pred_check_branch
          %120 = sbr.rel (%p118) target = $region16
        $region15: #{tpu_custom_call.1} parent=11 // pred_region
          _
        $region16: #{tpu_custom_call.1} parent=11 // pred_fallthru
          _
      $region12: #{tpu_custom_call.1} parent=5 // pred_fallthru
        _
      %p121 = scmp.lt.s32.totalorder %s14, 2
      // Predicated region
      $region17: #{tpu_custom_call.1} parent=5 // pred_check
        %p122 = pneg %p121
      $region18: #{tpu_custom_call.1} parent=5 // pred_check_branch
        %124 = sbr.rel (%p122) target = $region20
      $region19: #{tpu_custom_call.1} parent=5 // pred_region
        // Predicated region
        $region21: #{tpu_custom_call.1} parent=19 // pred_check
          %p125 = pneg %p48
        $region22: #{tpu_custom_call.1} parent=19 // pred_check_branch
          %127 = sbr.rel (%p125) target = $region24
        $region23: #{tpu_custom_call.1} parent=19 // pred_region
          %s128 = sand.u32 %s38, 1
          %s129 = scalar_lea.sflag [#allocation3], %s128
          %s130 = sand.u32 %s38, 1
          %s131 = smul.addr %s130, 8
          %s132 = scalar_lea.vmem [#allocation2], %s131
          %s133 = smul.u32 2, %s22
          %s135 = ssub.s32 128, 128
          %136 = vsyncadd %s129, %s135
          %s137 = smul.addr %s21, 2
          %s138 = sadd.s32 %s133, %s137
          %s139 = smul.addr %s138, 64
          %s140 = scalar_lea.hbm %s0, %s139
          %s142 = sshll.u32 %s132, 4
          %s143 = int_to_ptr.vmem [resolvable:$true] %s142
          %145 = dma.hbm_to_vmem [thread:$0]  %s140, 128, %s143, %s129
        $region24: #{tpu_custom_call.1} parent=19 // pred_fallthru
          _
      $region20: #{tpu_custom_call.1} parent=5 // pred_fallthru
        _
      %p146 = scmp.le.s32.totalorder 1, %s14
      %p147 = scmp.lt.s32.totalorder %s14, 3
      %p148 = pnand %p146, %p147
      %p149 = pneg %p148
      // Predicated region
      $region25: #{tpu_custom_call.1} parent=5 // pred_check
        _
      $region26: #{tpu_custom_call.1} parent=5 // pred_check_branch
        %151 = sbr.rel (%p148) target = $region28
      $region27: #{tpu_custom_call.1} parent=5 // pred_region
        %s152 = ssub.s32 %s14, 1
        %s153 = sand.u32 %s41, 1
        %s154 = scalar_lea.sflag [#allocation3], %s153
        %s155 = sand.u32 %s41, 1
        %s156 = smul.addr %s155, 8
        %s157 = scalar_lea.vmem [#allocation2], %s156
        // Predicated region
        $region29: #{tpu_custom_call.1} parent=27 // pred_check
          %p158 = pneg %p54
        $region30: #{tpu_custom_call.1} parent=27 // pred_check_branch
          %160 = sbr.rel (%p158) target = $region32
        $region31: #{tpu_custom_call.1} parent=27 // pred_region
          %161 = dma.done %s154, 128
        $region32: #{tpu_custom_call.1} parent=27 // pred_fallthru
          _
        %s162 = sand.u32 %s41, 1
        %s163 = scalar_lea.sflag [#allocation3], %s162
        %s164 = sand.u32 %s41, 1
        %s165 = smul.addr %s164, 8
        %s166 = scalar_lea.vmem [#allocation2], %s165
        %p167 = pneg %p54
        %p168 = pneg %p51
        %p169 = pneg %p75
        %p170 = pneg %p72
        %p171 = pneg %p103
        %p172 = pneg %p100
        %s173 = sand.u32 %s90, 1
        %s174 = scalar_lea.sflag [#allocation4], %s173
        %s175 = sand.u32 %s90, 1
        %s176 = smul.addr %s175, 8
        %s177 = scalar_lea.vmem [#allocation5], %s176
        %s178 = smul.u32 2, %s24
        %s179 = smul.u32 2, %s24
        %v180 = vld [vmem:[%s1] sm:$0xf]
        %v181 = vld [vmem:[%s157] sm:$0xff]
        %183 = vset.pattern.permute.xlu0 0
        %184 = vperm.xlu0 %183, %v180
        %v185 = vpop.permute.xlu0 %184
        %v187 = vunpack.c.l.s4 839922192
        %v188 = vunpack.c.0.s8 %v187
        %v189 = vlaneseq
        %v190 = vshrl.u32 %v189, 7
        %v191 = vsub.s32 %v188, %v190
        %v192 = vrot.slane %v185, %v191
        %v194 = vmul.f32 %v181, %v192
        %v196 = vcombine.high %v194, %v194
        %vm198 = vcmask 1043456
        %v199 = vsel %vm198, %v194, 0.0
        %v200 = vrot.slane %v199, 4
        %v201 = vadd.f32 %v199, %v200
        %v202 = vrot.slane %v201, 2
        %v203 = vadd.f32 %v201, %v202
        %v204 = vrot.slane %v203, 1
        %v205 = vadd.f32 %v203, %v204
        %v206 = vsel %vm198, %v196, 0.0
        %v207 = vrot.slane %v206, 4
        %v208 = vadd.f32 %v206, %v207
        %v209 = vrot.slane %v208, 2
        %v210 = vadd.f32 %v208, %v209
        %v211 = vrot.slane %v210, 1
        %v212 = vadd.f32 %v210, %v211
        %v213 = vxor.u32 %v205, 2147483648
        %v214 = vxor.u32 %v212, 2147483648
        %v215 = vmul.f32 %v213, 1.442695
        %v216 = vpow.pop %v215
        %v217 = vmul.f32 %v214, 1.442695
        %v218 = vpow.pop %v217
        %v219 = vadd.f32 %v216, 1.0
        %v220 = vadd.f32 %v218, 1.0
        %v221 = vrcp.pop %v219
        %v222 = vmul.f32 1.0, %v221
        %v223 = vrcp.pop %v220
        %v224 = vmul.f32 1.0, %v223
        %v227 = vcombine.low %v222, %v224
        %v229 = vmul.f32 %v181, %v227
        %230 = vst [vmem:[%s177] sm:$0xff] %v229
        %s231 = sand.u32 %s90, 1
        %s232 = scalar_lea.sflag [#allocation4], %s231
        %s233 = sand.u32 %s90, 1
        %s234 = smul.addr %s233, 8
        %s235 = scalar_lea.vmem [#allocation5], %s234
        // Predicated region
        $region33: #{tpu_custom_call.1} parent=27 // pred_check
          %p236 = pneg %p100
        $region34: #{tpu_custom_call.1} parent=27 // pred_check_branch
          %238 = sbr.rel (%p236) target = $region36
        $region35: #{tpu_custom_call.1} parent=27 // pred_region
          %s239 = smul.u32 2, %s24
          %s241 = ssub.s32 128, 128
          %242 = vsyncadd %s232, %s241
          %s243 = smul.addr %s23, 2
          %s244 = sadd.s32 %s239, %s243
          %s245 = smul.addr %s244, 64
          %s246 = scalar_lea.hbm %s2, %s245
          %s248 = sshll.u32 %s235, 4
          %s249 = int_to_ptr.vmem [resolvable:$true] %s248
          %251 = dma.vmem_to_hbm [thread:$0]  %s249, 128, %s246, %s232
        $region36: #{tpu_custom_call.1} parent=27 // pred_fallthru
          _
      $region28: #{tpu_custom_call.1} parent=5 // pred_fallthru
        _
      %p252 = scmp.le.s32.totalorder 2, %s14
      // Predicated region
      $region37: #{tpu_custom_call.1} parent=5 // pred_check
        %p253 = pneg %p252
      $region38: #{tpu_custom_call.1} parent=5 // pred_check_branch
        %255 = sbr.rel (%p253) target = $region40
      $region39: #{tpu_custom_call.1} parent=5 // pred_region
        %s256 = ssub.s32 %s14, 2
        // Predicated region
        $region41: #{tpu_custom_call.1} parent=39 // pred_check
          %p257 = pneg %p106
        $region42: #{tpu_custom_call.1} parent=39 // pred_check_branch
          %259 = sbr.rel (%p257) target = $region44
        $region43: #{tpu_custom_call.1} parent=39 // pred_region
          %s260 = sand.u32 %s91, 1
          %s261 = scalar_lea.sflag [#allocation4], %s260
          %s262 = sand.u32 %s91, 1
          %s263 = smul.addr %s262, 8
          %s264 = scalar_lea.vmem [#allocation5], %s263
          %265 = dma.done %s261, 128
        $region44: #{tpu_custom_call.1} parent=39 // pred_fallthru
          _
      $region40: #{tpu_custom_call.1} parent=5 // pred_fallthru
        _
    $region6: #{tpu_custom_call.1} parent=1 // loop_footer
      %s18 = sadd.s32 1, %s14
    $region7: #{tpu_custom_call.1} parent=1 // loop_footer_branch
      %13 = sbr.rel target = $region3
    $region8: #{tpu_custom_call.1} parent=1 // loop_exit
      _
    %266 = vsyncpa [#allocation3], 1
    %s267 = scalar_lea.sflag [#allocation3], 1
    %268 = vsyncpa %s267, 1
    %269 = vsyncpa [#allocation4], 1
    %s270 = scalar_lea.sflag [#allocation4], 1
    %271 = vsyncpa %s270, 1

</llo_original>
